<compile_context>
chip_gen: v6e
topology: v6e:2x2x1
jax: 0.10.0
libtpu: 0.0.40
codegen_flags: <defaults>
</compile_context>

<pallas_src>
import functools

import jax
import jax.numpy as jnp
from jax.experimental import pallas as pl
from jax.experimental.pallas import tpu as pltpu

ADL_DROP_RATE = 0.75
ADL_DROP_THRESHOLD = 0.8

# Conservative pipeline-buffer budget: fits v7x's 64 MiB/TC VMEM with headroom,
# well under v5e/v6e physical (128 MiB).  The default *scoped* limit (16/32 MiB)
# is raised explicitly via vmem_limit_bytes below.
_DEFAULT_VMEM_BUDGET = 48 << 20
_VMEM_HEADROOM = 8 << 20
_TARGET_BLOCK_BYTES = 8 << 20


def _binary_decision(key, drop_rate):
    """floor(U[0,1) + drop_rate): 1.0 with prob drop_rate else 0.0 (one scalar per batch,
    as in the original ADL module)."""
    r = jax.random.uniform(key, (), dtype=jnp.float32) + drop_rate
    return jnp.floor(r)


def _choose_batch_tile(batch, per_sample_bytes, budget_bytes,
                       target_block_bytes=_TARGET_BLOCK_BYTES):
    """Largest divisor Bt of batch s.t. the double-buffered in+out slab fits the
    budget; stop growing once blocks are big enough to saturate HBM bandwidth."""
    best = 1
    for bt in range(1, batch + 1):
        if batch % bt:
            continue
        if 4 * bt * per_sample_bytes > budget_bytes:   # 2 bufs x (in + out)
            break
        best = bt
        if bt * per_sample_bytes >= target_block_bytes:
            break
    return best


def _choose_channel_tile(C, HW, itemsize, budget_bytes):
    """Channel tile for the two-pass path (must divide C and be a multiple of 8,
    or equal C, to satisfy the (8,128) block constraint)."""
    # apply kernel is the binding consumer: 2*(x_in + map_in + out) per step
    max_ct = (budget_bytes // 2 - HW * 4) // (2 * HW * itemsize)
    best = None
    for ct in range(8, C + 1, 8):
        if C % ct == 0 and ct <= max_ct:
            best = ct
    if best is None:
        # TODO(synk): also tile the HW axis for extreme spatial sizes / odd C.
        best = 8 if C % 8 == 0 else C
    return best


# ---------------------------------------------------------------------------
# Fused single-pass kernel: whole per-sample slab resident in VMEM.
# ---------------------------------------------------------------------------
def _adl_fused_kernel(binary_ref, x_ref, o_ref, *, drop_threshold, channel_axis):
    """x_ref / o_ref: (Bt, C, HW) if channel_axis == 1, (Bt, HW, C) if channel_axis == 2."""
    spatial_axis = 3 - channel_axis
    x = x_ref[...]                                   # native dtype (f32 or bf16)
    xf = x.astype(jnp.float32)

    # per-sample channel mean (keepdim); cross-lane (XLU) reduce in the lane-dense layout
    attention = jnp.mean(xf, axis=channel_axis, keepdims=True)
    importance_map = jax.nn.sigmoid(attention)       # EUP

    # per-sample spatial max of the attention map
    max_val = jnp.max(attention, axis=spatial_axis, keepdims=True)    # (Bt,1,1)
    drop_mask = (attention < max_val * drop_threshold).astype(jnp.float32)

    binary = binary_ref[0].astype(jnp.float32)       # SMEM int32 scalar -> 0.0 / 1.0
    selected = (1.0 - binary) * importance_map + binary * drop_mask

    # broadcast multiply in the native dtype (halves vreg pressure / HBM-matched bf16 path)
    o_ref[...] = (x * selected.astype(x.dtype)).astype(o_ref.dtype)


def _run_fused(x_flat, binary_i32, *, drop_threshold, channel_axis, bt,
               vmem_budget_bytes):
    B, d1, d2 = x_flat.shape
    itemsize = jnp.dtype(x_flat.dtype).itemsize
    block = (bt, d1, d2)
    block_bytes = bt * d1 * d2 * itemsize
    # 2 pipeline buffers x (in + out) must fit the budget.
    assert 4 * block_bytes <= vmem_budget_bytes, "ADL fused slab exceeds VMEM budget"
    hw = d2 if channel_axis == 1 else d1
    nelem = B * d1 * d2

    kernel = functools.partial(_adl_fused_kernel,
                               drop_threshold=drop_threshold,
                               channel_axis=channel_axis)
    return pl.pallas_call(
        kernel,
        out_shape=jax.ShapeDtypeStruct(x_flat.shape, x_flat.dtype),
        grid_spec=pltpu.PrefetchScalarGridSpec(
            num_scalar_prefetch=1,
            grid=(B // bt,),
            in_specs=[pl.BlockSpec(block, lambda i, bin_ref: (i, 0, 0))],
            out_specs=pl.BlockSpec(block, lambda i, bin_ref: (i, 0, 0)),
        ),
        compiler_params=pltpu.CompilerParams(
            dimension_semantics=("parallel",),
            vmem_limit_bytes=int(4 * block_bytes + _VMEM_HEADROOM),
        ),
        cost_estimate=pl.CostEstimate(
            flops=int(3 * nelem),
            transcendentals=int(B * hw),
            bytes_accessed=int(2 * nelem * itemsize),
        ),
    )(binary_i32, x_flat)


# ---------------------------------------------------------------------------
# Two-pass path (per-sample slab too large for VMEM, e.g. v7x 64 MiB/TC):
#   pass 1: per-sample selected_map (B, 1, HW), accumulating the channel sum
#           over C-chunks directly in the resident output block,
#   pass 2: elementwise apply, tiled over (B, C-chunks), both axes parallel.
# ---------------------------------------------------------------------------
def _adl_stats_kernel(binary_ref, x_ref, map_ref, *, drop_threshold, inv_channels):
    c = pl.program_id(1)

    @pl.when(c == 0)
    def _():
        map_ref[...] = jnp.zeros_like(map_ref)

    # accumulate channel sum for this C-chunk
    map_ref[...] += jnp.sum(x_ref[...].astype(jnp.float32), axis=1, keepdims=True)

    @pl.when(c == pl.num_programs(1) - 1)
    def _():
        attention = map_ref[...] * inv_channels                 # (1,1,HW)
        importance_map = jax.nn.sigmoid(attention)
        max_val = jnp.max(attention, axis=2, keepdims=True)     # (1,1,1)
        drop_mask = (attention < max_val * drop_threshold).astype(jnp.float32)
        binary = binary_ref[0].astype(jnp.float32)
        map_ref[...] = (1.0 - binary) * importance_map + binary * drop_mask


def _adl_apply_kernel(x_ref, map_ref, o_ref):
    x = x_ref[...]
    o_ref[...] = (x * map_ref[...].astype(x.dtype)).astype(o_ref.dtype)


def _run_two_pass(x_flat, binary_i32, *, drop_threshold, ct):
    B, C, HW = x_flat.shape
    itemsize = jnp.dtype(x_flat.dtype).itemsize
    n_c = C // ct

    stats_kernel = functools.partial(_adl_stats_kernel,
                                     drop_threshold=drop_threshold,
                                     inv_channels=1.0 / C)
    stats_vmem = 2 * ct * HW * itemsize + 2 * HW * 4 + _VMEM_HEADROOM
    selected_map = pl.pallas_call(
        stats_kernel,
        out_shape=jax.ShapeDtypeStruct((B, 1, HW), jnp.float32),
        grid_spec=pltpu.PrefetchScalarGridSpec(
            num_scalar_prefetch=1,
            grid=(B, n_c),
            in_specs=[pl.BlockSpec((1, ct, HW), lambda b, c, bin_ref: (b, c, 0))],
            out_specs=pl.BlockSpec((1, 1, HW), lambda b, c, bin_ref: (b, 0, 0)),
        ),
        compiler_params=pltpu.CompilerParams(
            dimension_semantics=("parallel", "arbitrary"),
            vmem_limit_bytes=int(stats_vmem),
        ),
        cost_estimate=pl.CostEstimate(
            flops=int(B * C * HW + 4 * B * HW),
            transcendentals=int(B * HW),
            bytes_accessed=int(B * C * HW * itemsize + B * HW * 4),
        ),
    )(binary_i32, x_flat)

    apply_vmem = 2 * (2 * ct * HW * itemsize + HW * 4) + _VMEM_HEADROOM
    out_flat = pl.pallas_call(
        _adl_apply_kernel,
        out_shape=jax.ShapeDtypeStruct((B, C, HW), x_flat.dtype),
        grid_spec=pltpu.PrefetchScalarGridSpec(
            num_scalar_prefetch=0,
            grid=(B, n_c),
            in_specs=[pl.BlockSpec((1, ct, HW), lambda b, c: (b, c, 0)),
                      pl.BlockSpec((1, 1, HW), lambda b, c: (b, 0, 0))],
            out_specs=pl.BlockSpec((1, ct, HW), lambda b, c: (b, c, 0)),
        ),
        compiler_params=pltpu.CompilerParams(
            dimension_semantics=("parallel", "parallel"),
            vmem_limit_bytes=int(apply_vmem),
        ),
        cost_estimate=pl.CostEstimate(
            flops=int(B * C * HW),
            transcendentals=0,
            bytes_accessed=int(2 * B * C * HW * itemsize + B * HW * 4),
        ),
    )(x_flat, selected_map)
    return out_flat


# ---------------------------------------------------------------------------
# Public wrapper
# ---------------------------------------------------------------------------
def adl_forward(x, key, *, drop_rate=ADL_DROP_RATE,
                drop_threshold=ADL_DROP_THRESHOLD, training=True,
                vmem_budget_bytes=_DEFAULT_VMEM_BUDGET,
                allow_layout_transpose=True):
    """ADL forward.  x: (B, C, H, W) NCHW, f32 or bf16."""
    if not 0.0 <= drop_rate <= 1.0:
        raise ValueError("Drop rate must be in range [0, 1].")
    if not 0.0 <= drop_threshold <= 1.0:
        raise ValueError("Drop threshold must be in range [0, 1].")
    if not training:
        return x

    B, C, H, W = x.shape
    HW = H * W
    itemsize = jnp.dtype(x.dtype).itemsize

    binary_i32 = _binary_decision(key, drop_rate).astype(jnp.int32).reshape(1)

    per_sample_bytes = C * HW * itemsize
    fused_fits = 4 * per_sample_bytes <= vmem_budget_bytes

    # Lane-dense layout: if the flattened spatial dim is not 128-aligned but C is
    # (the common CNN case: HW = 49/196, C = 256/512/...), present (B, HW, C) so
    # stores are unmasked full-width vst and vregs are densely packed.
    lane_dense = (allow_layout_transpose and fused_fits
                  and C % 128 == 0 and HW % 128 != 0)

    if fused_fits:
        if lane_dense:
            x_flat = jnp.transpose(x.reshape(B, C, HW), (0, 2, 1))   # (B, HW, C)
            channel_axis = 2
        else:
            x_flat = x.reshape(B, C, HW)
            channel_axis = 1
        bt = _choose_batch_tile(B, per_sample_bytes, vmem_budget_bytes)
        out_flat = _run_fused(x_flat, binary_i32,
                              drop_threshold=drop_threshold,
                              channel_axis=channel_axis, bt=bt,
                              vmem_budget_bytes=vmem_budget_bytes)
        if lane_dense:
            return jnp.transpose(out_flat, (0, 2, 1)).reshape(B, C, H, W)
        return out_flat.reshape(B, C, H, W)

    # Per-sample slab too large for the VMEM budget: two-pass structure.
    x_flat = x.reshape(B, C, HW)
    ct = _choose_channel_tile(C, HW, itemsize, vmem_budget_bytes)
    out_flat = _run_two_pass(x_flat, binary_i32,
                             drop_threshold=drop_threshold, ct=ct)
    return out_flat.reshape(B, C, H, W)


def _adl_reference(x, binary, drop_threshold):
    """Pure-JAX reference mirroring the PyTorch module."""
    xf = x.astype(jnp.float32)
    attention = jnp.mean(xf, axis=1, keepdims=True)                  # (B,1,H,W)
    importance_map = jax.nn.sigmoid(attention)
    max_val = jnp.max(attention, axis=(1, 2, 3), keepdims=True)      # (B,1,1,1)
    drop_mask = (attention < max_val * drop_threshold).astype(jnp.float32)
    selected = (1.0 - binary) * importance_map + binary * drop_mask
    return x * selected.astype(x.dtype)


if __name__ == "__main__":
    root = jax.random.PRNGKey(0)
    kx, ksel, kx2, kx3, kx4 = jax.random.split(root, 5)

    binary = _binary_decision(ksel, ADL_DROP_RATE)

    # 1) default NCHW-flat fused path (C on sublanes, HW = 256 is lane-aligned)
    x = jax.random.normal(kx, (2, 4, 16, 16), dtype=jnp.float32)
    out = jax.block_until_ready(adl_forward(x, ksel, training=True))
    ref = _adl_reference(x, binary, ADL_DROP_THRESHOLD)
    assert jnp.allclose(out, ref, atol=1e-5, rtol=1e-5), "fused NCHW path mismatch"

    # 2) both branches of the stochastic selection, deterministically
    for forced_rate in (0.0, 1.0):
        out_f = jax.block_until_ready(
            adl_forward(x, ksel, drop_rate=forced_rate, training=True))
        bin_f = _binary_decision(ksel, forced_rate)
        ref_f = _adl_reference(x, bin_f, ADL_DROP_THRESHOLD)
        assert jnp.allclose(out_f, ref_f, atol=1e-5, rtol=1e-5), "forced-branch mismatch"

    # 3) lane-dense path (C % 128 == 0, HW % 128 != 0 -> (B, HW, C) layout)
    x2 = jax.random.normal(kx2, (2, 128, 4, 4), dtype=jnp.float32)
    out2 = jax.block_until_ready(adl_forward(x2, ksel, training=True))
    ref2 = _adl_reference(x2, binary, ADL_DROP_THRESHOLD)
    assert jnp.allclose(out2, ref2, atol=1e-5, rtol=1e-5), "lane-dense path mismatch"

    # 4) two-pass path (force a tiny VMEM budget so the fused slab "does not fit")
    x3 = jax.random.normal(kx3, (2, 16, 8, 8), dtype=jnp.float32)
    out3 = jax.block_until_ready(
        adl_forward(x3, ksel, training=True, vmem_budget_bytes=12 * 1024))
    ref3 = _adl_reference(x3, binary, ADL_DROP_THRESHOLD)
    assert jnp.allclose(out3, ref3, atol=1e-5, rtol=1e-5), "two-pass path mismatch"

    # 5) bf16 I/O (reductions/sigmoid in f32, final multiply in bf16)
    x4 = jax.random.normal(kx4, (2, 4, 8, 8), dtype=jnp.bfloat16)
    out4 = jax.block_until_ready(adl_forward(x4, ksel, training=True))
    ref4 = _adl_reference(x4, binary, ADL_DROP_THRESHOLD)
    assert jnp.allclose(out4.astype(jnp.float32), ref4.astype(jnp.float32),
                        atol=5e-2, rtol=5e-2), "bf16 path mismatch"

    # 6) eval mode is identity
    out_eval = adl_forward(x, ksel, training=False)
    assert jnp.array_equal(out_eval, x)

    print("KERNEL_OK")
</pallas_src>

<mosaic_0001>
module attributes {stable_mosaic.version = 11 : i64} {
  func.func @_adl_fused_kernel(%arg0: i32, %arg1: memref<1xi32, #tpu.memory_space<smem>>, %arg2: memref<2x4x256xf32, #tpu.memory_space<vmem>>, %arg3: memref<2x4x256xf32, #tpu.memory_space<vmem>>) attributes {dimension_semantics = [#tpu.dimension_semantics<parallel>], iteration_bounds = array<i64: 1>, scalar_prefetch = 1 : i64, scratch_operands = 0 : i64, tpu.core_type = #tpu.core_type<tc>, window_params = [{transform_indices = @transform_0, window_bounds = array<i64: 2, 4, 256>}, {transform_indices = @transform_1, window_bounds = array<i64: 2, 4, 256>}]} {
    %c0 = arith.constant 0 : index
    %c0_0 = arith.constant 0 : index
    %c0_1 = arith.constant 0 : index
    %0 = vector.load %arg2[%c0, %c0_0, %c0_1] : memref<2x4x256xf32, #tpu.memory_space<vmem>>, vector<2x4x256xf32>
    %cst = arith.constant dense<0.000000e+00> : vector<2x256xf32>
    %1 = vector.multi_reduction <add>, %0, %cst [1] : vector<2x4x256xf32> to vector<2x256xf32>
    %2 = vector.shape_cast %1 : vector<2x256xf32> to vector<2x1x256xf32>
    %cst_2 = arith.constant 4.000000e+00 : f32
    %3 = vector.broadcast %cst_2 : f32 to vector<2x1x256xf32>
    %4 = arith.divf %2, %3 : vector<2x1x256xf32>
    %5 = arith.negf %4 : vector<2x1x256xf32>
    %6 = math.exp %5 : vector<2x1x256xf32>
    %cst_3 = arith.constant 1.000000e+00 : f32
    %7 = vector.broadcast %cst_3 : f32 to vector<2x1x256xf32>
    %8 = arith.addf %7, %6 : vector<2x1x256xf32>
    %9 = arith.divf %7, %8 : vector<2x1x256xf32>
    %cst_4 = arith.constant dense<0xFF800000> : vector<2x1xf32>
    %10 = vector.multi_reduction <maximumf>, %4, %cst_4 [2] : vector<2x1x256xf32> to vector<2x1xf32>
    %11 = vector.shape_cast %10 : vector<2x1xf32> to vector<2x1x1xf32>
    %cst_5 = arith.constant 8.000000e-01 : f32
    %12 = vector.broadcast %cst_5 : f32 to vector<2x1x1xf32>
    %13 = arith.mulf %11, %12 : vector<2x1x1xf32>
    %14 = vector.broadcast %13 : vector<2x1x1xf32> to vector<2x1x256xf32>
    %15 = arith.cmpf olt, %4, %14 : vector<2x1x256xf32>
    %16 = arith.extui %15 : vector<2x1x256xi1> to vector<2x1x256xi32>
    %17 = arith.sitofp %16 : vector<2x1x256xi32> to vector<2x1x256xf32>
    %c0_6 = arith.constant 0 : index
    %18 = memref.load %arg1[%c0_6] : memref<1xi32, #tpu.memory_space<smem>>
    %19 = arith.sitofp %18 : i32 to f32
    %cst_7 = arith.constant 1.000000e+00 : f32
    %20 = arith.subf %cst_7, %19 : f32
    %21 = vector.broadcast %20 : f32 to vector<2x1x256xf32>
    %22 = arith.mulf %21, %9 : vector<2x1x256xf32>
    %23 = vector.broadcast %19 : f32 to vector<2x1x256xf32>
    %24 = arith.mulf %23, %17 : vector<2x1x256xf32>
    %25 = arith.addf %22, %24 : vector<2x1x256xf32>
    %26 = vector.broadcast %25 : vector<2x1x256xf32> to vector<2x4x256xf32>
    %27 = arith.mulf %0, %26 : vector<2x4x256xf32>
    %c0_8 = arith.constant 0 : index
    %c0_9 = arith.constant 0 : index
    %c0_10 = arith.constant 0 : index
    %28 = vector.load %arg3[%c0_8, %c0_9, %c0_10] : memref<2x4x256xf32, #tpu.memory_space<vmem>>, vector<2x4x256xf32>
    tpu.vector_store %arg3[%c0_8, %c0_9, %c0_10], %27 {strides = array<i32>} : memref<2x4x256xf32, #tpu.memory_space<vmem>>, vector<2x4x256xf32>,
    return
  }
  func.func @transform_0(%arg0: i32, %arg1: memref<1xi32, #tpu.memory_space<smem>>) -> (i32, i32, i32) {
    %c0_i32 = arith.constant 0 : i32
    %c0_i32_0 = arith.constant 0 : i32
    %c0_i32_1 = arith.constant 0 : i32
    return %arg0, %c0_i32, %c0_i32_0 : i32, i32, i32
  }
  func.func @transform_1(%arg0: i32, %arg1: memref<1xi32, #tpu.memory_space<smem>>) -> (i32, i32, i32) {
    %c0_i32 = arith.constant 0 : i32
    %c0_i32_0 = arith.constant 0 : i32
    %c0_i32_1 = arith.constant 0 : i32
    return %arg0, %c0_i32, %c0_i32_0 : i32, i32, i32
  }
}

</mosaic_0001>

<llo_original>
// kernel: tpu_custom_call.1
$region0: #{tpu_custom_call.1}
  #allocation0 [shape = 'u32[]', space=smem, size = 0x4, offset = 0x4, fixed_abs, tag = 'smem constant byte address 0x4 - core index']
  #allocation1 [shape = 'u32[144,128]{1,0:T(1,128)}', space=vmem, size = 0x12000, scoped, tag = 'internal scratch']
  #allocation2 [shape = 's32[1]{0}', space=sflag, size = 0x4, scoped, tag = 'scoped memory for tpu_custom_call.1']
  #allocation3 [shape = 's32[1]{0:T(128)S(6)}', space=smem, size = 0x200, scoped, tag = 'prefetched SMEM operand 0']
  %s0 = inlined_call_operand.<no memory space> [shape: s32[1], index: 0, kind: input, shape index: {}]
  %s1 = inlined_call_operand.hbm [shape: f32[2,4,256], index: 1, kind: input, shape index: {}]
  %s2 = inlined_call_operand.hbm [shape: f32[2,4,256], index: 2, kind: output, shape index: {}]
  %s3 = sld [smem:[#allocation0]]
  $region18: #{tpu_custom_call.1} parent=0
    _
  %s5 = ssub.s32 1, %s3
  %s6 = scalar_select 0, %s5, %s3
  %7 = sst [smem:[#allocation3]] %s0
  $region1: #{tpu_custom_call.1} parent=0
    #allocation4 [shape = 'u8[8192]{0}', space=vmem, size = 0x2000, scoped, tag = 'input window, operand 1, single buffered']
    #allocation5 [shape = 's32[1]{0}', space=sflag, size = 0x4, scoped, tag = 'scoped memory for tpu_custom_call.1']
    #allocation6 [shape = 's32[1]{0}', space=sflag, size = 0x4, scoped, tag = 'scoped memory for tpu_custom_call.1']
    #allocation7 [shape = 'u8[8192]{0}', space=vmem, size = 0x2000, scoped, tag = 'output window, operand 0, single buffered']
    %8 = vsyncpa [#allocation5], 0
    %9 = vsyncpa [#allocation6], 0
    // Predicated region
    $region2: #{tpu_custom_call.1} parent=1 // pred_check
      _
    $region3: #{tpu_custom_call.1} parent=1 // pred_check_branch
      %11 = sbr.rel (0) target = $region5
    $region4: #{tpu_custom_call.1} parent=1 // pred_region
      %s13 = ssub.s32 256, 256
      %14 = vsyncadd [#allocation5], %s13
      %s15 = sshll.u32 [#allocation4], 4
      %s16 = int_to_ptr.vmem [resolvable:$true] %s15
      %21 = dma.hbm_to_vmem [thread:$0]  %s1, 256, %s16, [#allocation5], 128, 128, 8
    $region5: #{tpu_custom_call.1} parent=1 // pred_fallthru
      _
    // Predicated region
    $region6: #{tpu_custom_call.1} parent=1 // pred_check
      _
    $region7: #{tpu_custom_call.1} parent=1 // pred_check_branch
      %23 = sbr.rel (0) target = $region9
    $region8: #{tpu_custom_call.1} parent=1 // pred_region
      %24 = dma.done [#allocation5], 256
    $region9: #{tpu_custom_call.1} parent=1 // pred_fallthru
      _
    %v25 = vld [vmem:[#allocation4] sm:$0xff]
    %v26 = vld [vmem:[#allocation4 + $0x8] sm:$0xff]
    %v29 = vcombine.high %v25, %v25
    %v30 = vcombine.high %v26, %v26
    %vm33 = vcmask 1043456
    %v34 = vsel %vm33, %v25, 0.0
    %v35 = vrot.slane %v34, 4
    %v36 = vadd.f32 %v34, %v35
    %v37 = vrot.slane %v36, 2
    %v38 = vadd.f32 %v36, %v37
    %v39 = vrot.slane %v38, 1
    %v40 = vadd.f32 %v38, %v39
    %v41 = vsel %vm33, %v29, 0.0
    %v42 = vrot.slane %v41, 4
    %v43 = vadd.f32 %v41, %v42
    %v44 = vrot.slane %v43, 2
    %v45 = vadd.f32 %v43, %v44
    %v46 = vrot.slane %v45, 1
    %v47 = vadd.f32 %v45, %v46
    %v48 = vsel %vm33, %v26, 0.0
    %v49 = vrot.slane %v48, 4
    %v50 = vadd.f32 %v48, %v49
    %v51 = vrot.slane %v50, 2
    %v52 = vadd.f32 %v50, %v51
    %v53 = vrot.slane %v52, 1
    %v54 = vadd.f32 %v52, %v53
    %v55 = vsel %vm33, %v30, 0.0
    %v56 = vrot.slane %v55, 4
    %v57 = vadd.f32 %v55, %v56
    %v58 = vrot.slane %v57, 2
    %v59 = vadd.f32 %v57, %v58
    %v60 = vrot.slane %v59, 1
    %v61 = vadd.f32 %v59, %v60
    %v62 = vrcp.pop 4.0
    %v63 = vmul.f32 %v40, %v62
    %v64 = vmul.f32 %v47, %v62
    %v65 = vmul.f32 %v54, %v62
    %v66 = vmul.f32 %v61, %v62
    %v67 = vxor.u32 %v63, 2147483648
    %v68 = vxor.u32 %v64, 2147483648
    %v69 = vxor.u32 %v65, 2147483648
    %v70 = vxor.u32 %v66, 2147483648
    %v71 = vmul.f32 %v67, 1.442695
    %v72 = vpow.pop %v71
    %v73 = vmul.f32 %v68, 1.442695
    %v74 = vpow.pop %v73
    %v75 = vmul.f32 %v69, 1.442695
    %v76 = vpow.pop %v75
    %v77 = vmul.f32 %v70, 1.442695
    %v78 = vpow.pop %v77
    %v79 = vadd.f32 %v72, 1.0
    %v80 = vadd.f32 %v74, 1.0
    %v81 = vadd.f32 %v76, 1.0
    %v82 = vadd.f32 %v78, 1.0
    %v83 = vrcp.pop %v79
    %v84 = vmul.f32 1.0, %v83
    %v85 = vrcp.pop %v80
    %v86 = vmul.f32 1.0, %v85
    %v87 = vrcp.pop %v81
    %v88 = vmul.f32 1.0, %v87
    %v89 = vrcp.pop %v82
    %v90 = vmul.f32 1.0, %v89
    %v91 = vmax.f32 %v63, %v64
    %92 = vmax.xlane.f32.xlu0 %v91
    %v93 = vpop.xlane.xlu0 %92
    %v94 = vmax.f32 %v65, %v66
    %95 = vmax.xlane.f32.xlu0 %v94
    %v96 = vpop.xlane.xlu0 %95
    %v97 = vmul.f32 %v93, 0.8
    %v98 = vmul.f32 %v96, 0.8
    %vm99 = vcmp.lt.f32.partialorder %v63, %v97
    %vm100 = vcmp.lt.f32.partialorder %v64, %v97
    %vm101 = vcmp.lt.f32.partialorder %v65, %v98
    %vm102 = vcmp.lt.f32.partialorder %v66, %v98
    %v103 = vsel %vm99, 1, 0
    %v104 = vsel %vm100, 1, 0
    %v105 = vsel %vm101, 1, 0
    %v106 = vsel %vm102, 1, 0
    %v107 = vcvt.s32.f32 %v103
    %v108 = vcvt.s32.f32 %v104
    %v109 = vcvt.s32.f32 %v105
    %v110 = vcvt.s32.f32 %v106
    %s111 = sld [smem:[#allocation3]]
    %s112 = scvt.s32.f32 %s111
    %s113 = ssub.f32 1.0, %s112
    %v114 = vstv %s113
    %v115 = vmul.f32 %v114, %v84
    %v116 = vmul.f32 %v114, %v86
    %v117 = vmul.f32 %v114, %v88
    %v118 = vmul.f32 %v114, %v90
    %v119 = vstv %s112
    %v120 = vmul.f32 %v119, %v107
    %v121 = vmul.f32 %v119, %v108
    %v122 = vmul.f32 %v119, %v109
    %v123 = vmul.f32 %v119, %v110
    %v124 = vadd.f32 %v115, %v120
    %v125 = vadd.f32 %v116, %v121
    %v126 = vadd.f32 %v117, %v122
    %v127 = vadd.f32 %v118, %v123
    %v132 = vcombine.low %v124, %v125
    %v133 = vcombine.low %v126, %v127
    %v136 = vmul.f32 %v25, %v132
    %v137 = vmul.f32 %v26, %v133
    %138 = vst [vmem:[#allocation7] sm:$0xff] %v136
    %139 = vst [vmem:[#allocation7 + $0x8] sm:$0xff] %v137
    // Predicated region
    $region10: #{tpu_custom_call.1} parent=1 // pred_check
      _
    $region11: #{tpu_custom_call.1} parent=1 // pred_check_branch
      %141 = sbr.rel (0) target = $region13
    $region12: #{tpu_custom_call.1} parent=1 // pred_region
      %s143 = ssub.s32 256, 256
      %144 = vsyncadd [#allocation6], %s143
      %s145 = sshll.u32 [#allocation7], 4
      %s146 = int_to_ptr.vmem [resolvable:$true] %s145
      %151 = dma.vmem_to_hbm [thread:$0]  %s146, 256, %s2, [#allocation6], 128, 128, 8
    $region13: #{tpu_custom_call.1} parent=1 // pred_fallthru
      _
    // Predicated region
    $region14: #{tpu_custom_call.1} parent=1 // pred_check
      _
    $region15: #{tpu_custom_call.1} parent=1 // pred_check_branch
      %153 = sbr.rel (0) target = $region17
    $region16: #{tpu_custom_call.1} parent=1 // pred_region
      %154 = dma.done [#allocation6], 256
    $region17: #{tpu_custom_call.1} parent=1 // pred_fallthru
      _
    %155 = vsyncpa [#allocation5], 1
    %156 = vsyncpa [#allocation6], 1

</llo_original>
